<compile_context>
chip_gen: v5e
topology: v5e:2x2
jax: 0.10.0
libtpu: 0.0.40
codegen_flags: <defaults>
</compile_context>

<pallas_src>
import math

import jax
import jax.numpy as jnp
from jax.experimental import pallas as pl
from jax.experimental.pallas import tpu as pltpu

LANE_PACK = 4  # 4 x D(=32) = 128 lanes -> one full vreg lane group


def _make_kernel(P: int):
    def kernel(p_ref, a_ref, w_ref, wp_ref, b_ref, o_ref):
        # p_ref : (B*P,) f32 in SMEM (flat prosody, scalar-indexed)
        # a_ref : (rows, 128)  packed acoustic row block (batch dim squeezed)
        # w_ref : (128, 128)   block-diagonal W_a^T (resident across steps)
        # wp_ref: (P, 128)     W_p^T tiled 4x across lanes (resident)
        # b_ref : (1, 128)     bias tiled 4x across lanes (resident)
        # o_ref : (rows, 128)
        b = pl.program_id(0)

        # Per-batch prosody + bias correction: P(=4) scalar-broadcast VPU FMAs
        # producing a single (1, 128) vector -- off the MXU critical path.
        wp = wp_ref[...]
        corr = b_ref[...]
        for j in range(P):                       # static unroll, P == 4
            corr = corr + p_ref[b * P + j] * wp[j:j + 1, :]

        # One lane-dense MXU push over the whole row block, one fused add,
        # one full-block 128-lane store.
        acc = jnp.dot(a_ref[...], w_ref[...], preferred_element_type=jnp.float32)
        o_ref[...] = (acc + corr).astype(o_ref.dtype)

    return kernel


def prepare_params(weight, bias, acoustic_dim, lane_pack=LANE_PACK):
    """One-time parameter prep (outside the per-call path).

    weight: PyTorch nn.Linear layout (D, D+P);  bias: (D,).
    Returns:
      w_block    (lane_pack*D, lane_pack*D)  block-diag of W_a^T
      wp_packed  (P, lane_pack*D)            W_p^T tiled across lane groups
      bias_packed(1, lane_pack*D)            bias tiled across lane groups
    """
    D = acoustic_dim
    w_a_t = weight[:, :D].T                                   # (D, D)
    w_p_t = weight[:, D:].T                                    # (P, D)
    w_block = jnp.kron(jnp.eye(lane_pack, dtype=weight.dtype), w_a_t)
    wp_packed = jnp.tile(w_p_t, (1, lane_pack))                # (P, 4D)
    bias_packed = jnp.tile(bias.reshape(1, D), (1, lane_pack))  # (1, 4D)
    return w_block, wp_packed, bias_packed


def prosody_integrator(acoustic, prosody, w_block, wp_packed, bias_packed, *,
                       target_rows=1024, vmem_budget_bytes=8 << 20):
    """acoustic: (B, T, D), prosody: (B, P); packed params from prepare_params."""
    B, T, D = acoustic.shape
    P = prosody.shape[-1]
    LW = LANE_PACK * D
    assert w_block.shape == (LW, LW)
    assert wp_packed.shape == (P, LW)
    assert bias_packed.shape == (1, LW)

    # Pad T to a multiple of LANE_PACK so every packed 128-lane row holds 4
    # time steps of the SAME batch (keeps the per-batch correction exact).
    pad_t = (-T) % LANE_PACK
    if pad_t:
        # TODO(synk): avoid this extra copy by carrying a T padded to 4 through
        # the surrounding model in a full-model port.
        acoustic = jnp.pad(acoustic, ((0, 0), (0, pad_t), (0, 0)))
    Tp = T + pad_t
    Rp = Tp // LANE_PACK                        # packed rows per batch
    a_packed = acoustic.reshape(B, Rp, LW)      # contiguous: metadata-only

    # Packed-row block size: ~1024 rows (512 B/row f32) per step, capped by the
    # double-buffered (in + out) VMEM budget and by the per-batch extent.
    itemsize = acoustic.dtype.itemsize
    budget_rows = max(8, vmem_budget_bytes // (4 * LW * itemsize))  # 2 bufs x (in+out)
    target = max(8, min(target_rows, budget_rows))
    if Rp <= target:
        rows_per_block = Rp                      # full dim: any size allowed
    else:
        rows_per_block = (target // 8) * 8       # 8-sublane aligned interior blocks
    grid = (B, pl.cdiv(Rp, rows_per_block))

    out_packed = pl.pallas_call(
        _make_kernel(P),
        out_shape=jax.ShapeDtypeStruct((B, Rp, LW), acoustic.dtype),
        grid=grid,
        in_specs=[
            pl.BlockSpec(memory_space=pltpu.MemorySpace.SMEM),               # prosody (B*P,)
            pl.BlockSpec((None, rows_per_block, LW), lambda b, t: (b, t, 0)),  # acoustic block
            pl.BlockSpec((LW, LW), lambda b, t: (0, 0)),                     # W_block (resident)
            pl.BlockSpec((P, LW), lambda b, t: (0, 0)),                      # W_p^T packed
            pl.BlockSpec((1, LW), lambda b, t: (0, 0)),                      # bias packed
        ],
        out_specs=pl.BlockSpec((None, rows_per_block, LW), lambda b, t: (b, t, 0)),
        compiler_params=pltpu.CompilerParams(
            dimension_semantics=("parallel", "parallel")),
    )(prosody.reshape(-1), a_packed, w_block, wp_packed, bias_packed)

    out = out_packed.reshape(B, Tp, D)
    if pad_t:
        out = out[:, :T, :]
    return out


def reference(acoustic, prosody, weight, bias):
    B, T, D = acoustic.shape
    prosody_expanded = jnp.broadcast_to(prosody[:, None, :], (B, T, prosody.shape[-1]))
    combined = jnp.concatenate([acoustic, prosody_expanded], axis=-1)
    return combined @ weight.T + bias


if __name__ == "__main__":
    # config = {'acoustic_hidden_dim': 32}; prosody_dim fixed at 4.
    B, T, D, P = 2, 8, 32, 4

    key = jax.random.PRNGKey(0)
    k_a, k_p, k_w, k_b = jax.random.split(key, 4)

    acoustic = jax.random.normal(k_a, (B, T, D), dtype=jnp.float32)
    prosody = jax.random.normal(k_p, (B, P), dtype=jnp.float32)

    # Deterministic nn.Linear-style init: U(-1/sqrt(fan_in), 1/sqrt(fan_in)).
    fan_in = D + P
    bound = 1.0 / math.sqrt(fan_in)
    weight = jax.random.uniform(k_w, (D, D + P), minval=-bound, maxval=bound,
                                dtype=jnp.float32)
    bias = jax.random.uniform(k_b, (D,), minval=-bound, maxval=bound,
                              dtype=jnp.float32)

    # One-time weight split / block-diagonal lane packing (outside the call path).
    w_block, wp_packed, bias_packed = prepare_params(weight, bias, D)

    out = prosody_integrator(acoustic, prosody, w_block, wp_packed, bias_packed)
    out = jax.block_until_ready(out)

    ref = reference(acoustic, prosody, weight, bias)
    assert out.shape == (B, T, D)
    assert jnp.allclose(out, ref, atol=1e-5, rtol=1e-5), "mismatch vs reference"

    print("KERNEL_OK")
</pallas_src>

<mosaic_0001>
module attributes {stable_mosaic.version = 11 : i64} {
  func.func @kernel(%arg0: i32, %arg1: i32, %arg2: memref<8xf32, #tpu.memory_space<smem>>, %arg3: memref<1x2x128xf32, #tpu.memory_space<vmem>>, %arg4: memref<128x128xf32, #tpu.memory_space<vmem>>, %arg5: memref<4x128xf32, #tpu.memory_space<vmem>>, %arg6: memref<1x128xf32, #tpu.memory_space<vmem>>, %arg7: memref<1x2x128xf32, #tpu.memory_space<vmem>>) attributes {dimension_semantics = [#tpu.dimension_semantics<parallel>, #tpu.dimension_semantics<parallel>], iteration_bounds = array<i64: 2, 1>, scalar_prefetch = 0 : i64, scratch_operands = 0 : i64, tpu.core_type = #tpu.core_type<tc>, window_params = [{transform_indices = @transform_0, window_bounds = array<i64: 8>}, {transform_indices = @transform_1, window_bounds = array<i64: 1, 2, 128>}, {pipeline_mode = #tpu.pipeline_mode<synchronous>, transform_indices = @transform_2, window_bounds = array<i64: 128, 128>}, {pipeline_mode = #tpu.pipeline_mode<synchronous>, transform_indices = @transform_3, window_bounds = array<i64: 4, 128>}, {pipeline_mode = #tpu.pipeline_mode<synchronous>, transform_indices = @transform_4, window_bounds = array<i64: 1, 128>}, {transform_indices = @transform_5, window_bounds = array<i64: 1, 2, 128>}]} {
    %c0 = arith.constant 0 : index
    %c0_0 = arith.constant 0 : index
    %0 = vector.load %arg5[%c0, %c0_0] : memref<4x128xf32, #tpu.memory_space<vmem>>, vector<4x128xf32>
    %c0_1 = arith.constant 0 : index
    %c0_2 = arith.constant 0 : index
    %1 = vector.load %arg6[%c0_1, %c0_2] : memref<1x128xf32, #tpu.memory_space<vmem>>, vector<1x128xf32>
    %c4_i32 = arith.constant 4 : i32
    %2 = arith.muli %arg0, %c4_i32 : i32
    %c0_i32 = arith.constant 0 : i32
    %3 = arith.addi %2, %c0_i32 : i32
    %4 = arith.index_cast %3 : i32 to index
    %5 = memref.load %arg2[%4] : memref<8xf32, #tpu.memory_space<smem>>
    %6 = vector.extract_strided_slice %0 {offsets = [0, 0], sizes = [1, 128], strides = [1, 1]} : vector<4x128xf32> to vector<1x128xf32>
    %7 = vector.broadcast %5 : f32 to vector<1x128xf32>
    %8 = arith.mulf %7, %6 : vector<1x128xf32>
    %9 = arith.addf %1, %8 : vector<1x128xf32>
    %c4_i32_3 = arith.constant 4 : i32
    %10 = arith.muli %arg0, %c4_i32_3 : i32
    %c1_i32 = arith.constant 1 : i32
    %11 = arith.addi %10, %c1_i32 : i32
    %12 = arith.index_cast %11 : i32 to index
    %13 = memref.load %arg2[%12] : memref<8xf32, #tpu.memory_space<smem>>
    %14 = vector.extract_strided_slice %0 {offsets = [1, 0], sizes = [1, 128], strides = [1, 1]} : vector<4x128xf32> to vector<1x128xf32>
    %15 = vector.broadcast %13 : f32 to vector<1x128xf32>
    %16 = arith.mulf %15, %14 : vector<1x128xf32>
    %17 = arith.addf %9, %16 : vector<1x128xf32>
    %c4_i32_4 = arith.constant 4 : i32
    %18 = arith.muli %arg0, %c4_i32_4 : i32
    %c2_i32 = arith.constant 2 : i32
    %19 = arith.addi %18, %c2_i32 : i32
    %20 = arith.index_cast %19 : i32 to index
    %21 = memref.load %arg2[%20] : memref<8xf32, #tpu.memory_space<smem>>
    %22 = vector.extract_strided_slice %0 {offsets = [2, 0], sizes = [1, 128], strides = [1, 1]} : vector<4x128xf32> to vector<1x128xf32>
    %23 = vector.broadcast %21 : f32 to vector<1x128xf32>
    %24 = arith.mulf %23, %22 : vector<1x128xf32>
    %25 = arith.addf %17, %24 : vector<1x128xf32>
    %c4_i32_5 = arith.constant 4 : i32
    %26 = arith.muli %arg0, %c4_i32_5 : i32
    %c3_i32 = arith.constant 3 : i32
    %27 = arith.addi %26, %c3_i32 : i32
    %28 = arith.index_cast %27 : i32 to index
    %29 = memref.load %arg2[%28] : memref<8xf32, #tpu.memory_space<smem>>
    %30 = vector.extract_strided_slice %0 {offsets = [3, 0], sizes = [1, 128], strides = [1, 1]} : vector<4x128xf32> to vector<1x128xf32>
    %31 = vector.broadcast %29 : f32 to vector<1x128xf32>
    %32 = arith.mulf %31, %30 : vector<1x128xf32>
    %33 = arith.addf %25, %32 : vector<1x128xf32>
    %c0_6 = arith.constant 0 : index
    %c0_7 = arith.constant 0 : index
    %c0_8 = arith.constant 0 : index
    %34 = vector.load %arg3[%c0_6, %c0_7, %c0_8] : memref<1x2x128xf32, #tpu.memory_space<vmem>>, vector<1x2x128xf32>
    %35 = vector.shape_cast %34 : vector<1x2x128xf32> to vector<2x128xf32>
    %c0_9 = arith.constant 0 : index
    %c0_10 = arith.constant 0 : index
    %36 = vector.load %arg4[%c0_9, %c0_10] : memref<128x128xf32, #tpu.memory_space<vmem>>, vector<128x128xf32>
    %cst = arith.constant dense<0.000000e+00> : vector<2x128xf32>
    %37 = tpu.matmul %35, %36, %cst {dimension_numbers = #tpu.dot_dimension_numbers<[1], [0], [0], [1], [0, 0, 1, 1], [], []>} : vector<2x128xf32>, vector<128x128xf32>, vector<2x128xf32> -> vector<2x128xf32>
    %38 = vector.broadcast %33 : vector<1x128xf32> to vector<2x128xf32>
    %39 = arith.addf %37, %38 : vector<2x128xf32>
    %c0_11 = arith.constant 0 : index
    %c0_12 = arith.constant 0 : index
    %c0_13 = arith.constant 0 : index
    %40 = vector.load %arg7[%c0_11, %c0_12, %c0_13] : memref<1x2x128xf32, #tpu.memory_space<vmem>>, vector<1x2x128xf32>
    %41 = vector.shape_cast %40 : vector<1x2x128xf32> to vector<2x128xf32>
    %42 = vector.shape_cast %39 : vector<2x128xf32> to vector<1x2x128xf32>
    tpu.vector_store %arg7[%c0_11, %c0_12, %c0_13], %42 {strides = array<i32>} : memref<1x2x128xf32, #tpu.memory_space<vmem>>, vector<1x2x128xf32>,
    return
  }
  func.func @transform_0(%arg0: i32, %arg1: i32) -> i32 {
    %c0_i32 = arith.constant 0 : i32
    %c0_i32_0 = arith.constant 0 : i32
    return %c0_i32 : i32
  }
  func.func @transform_1(%arg0: i32, %arg1: i32) -> (i32, i32, i32) {
    %c0_i32 = arith.constant 0 : i32
    %c0_i32_0 = arith.constant 0 : i32
    return %arg0, %arg1, %c0_i32 : i32, i32, i32
  }
  func.func @transform_2(%arg0: i32, %arg1: i32) -> (i32, i32) {
    %c0_i32 = arith.constant 0 : i32
    %c0_i32_0 = arith.constant 0 : i32
    %c0_i32_1 = arith.constant 0 : i32
    return %c0_i32, %c0_i32_0 : i32, i32
  }
  func.func @transform_3(%arg0: i32, %arg1: i32) -> (i32, i32) {
    %c0_i32 = arith.constant 0 : i32
    %c0_i32_0 = arith.constant 0 : i32
    %c0_i32_1 = arith.constant 0 : i32
    return %c0_i32, %c0_i32_0 : i32, i32
  }
  func.func @transform_4(%arg0: i32, %arg1: i32) -> (i32, i32) {
    %c0_i32 = arith.constant 0 : i32
    %c0_i32_0 = arith.constant 0 : i32
    %c0_i32_1 = arith.constant 0 : i32
    return %c0_i32, %c0_i32_0 : i32, i32
  }
  func.func @transform_5(%arg0: i32, %arg1: i32) -> (i32, i32, i32) {
    %c0_i32 = arith.constant 0 : i32
    %c0_i32_0 = arith.constant 0 : i32
    return %arg0, %arg1, %c0_i32 : i32, i32, i32
  }
}

</mosaic_0001>

<llo_original>
// kernel: tpu_custom_call.1
$region0: #{tpu_custom_call.1}
  #allocation0 [shape = 'u32[]', space=smem, size = 0x4, offset = 0x4, fixed_abs, tag = 'smem constant byte address 0x4 - core index']
  #allocation1 [shape = 'u32[72,128]{1,0:T(1,128)}', space=vmem, size = 0x9000, scoped, tag = 'internal scratch']
  %s0 = inlined_call_operand.hbm [shape: f32[8], index: 0, kind: input, shape index: {}]
  %s1 = inlined_call_operand.hbm [shape: f32[2,2,128], index: 1, kind: input, shape index: {}]
  %s2 = inlined_call_operand.hbm [shape: f32[128,128], index: 2, kind: input, shape index: {}]
  %s3 = inlined_call_operand.hbm [shape: f32[4,128], index: 3, kind: input, shape index: {}]
  %s4 = inlined_call_operand.vmem [shape: f32[1,128], index: 4, kind: input, shape index: {}]
  %s5 = inlined_call_operand.hbm [shape: f32[2,2,128], index: 5, kind: output, shape index: {}]
  %s6 = sld [smem:[#allocation0]]
  $region69: #{tpu_custom_call.1} parent=0
    _
  %s8 = ssub.s32 1, %s6
  %s9 = scalar_select 0, %s8, %s6
  $region1: #{tpu_custom_call.1} parent=0
    #allocation2 [shape = 'u8[512]{0}', space=smem, size = 0x200, scoped, tag = 'input window, operand 0, single buffered']
    #allocation3 [shape = 's32[2]{0}', space=sflag, size = 0x8, scoped, tag = 'scoped memory for tpu_custom_call.1']
    #allocation4 [shape = 's32[2]{0}', space=sflag, size = 0x8, scoped, tag = 'scoped memory for tpu_custom_call.1']
    #allocation5 [shape = 's32[2]{0}', space=sflag, size = 0x8, scoped, tag = 'scoped memory for tpu_custom_call.1']
    #allocation6 [shape = 'u8[2048]{0}', space=vmem, size = 0x800, scoped, tag = 'input window, operand 1']
    #allocation7 [shape = 'u8[65536]{0}', space=vmem, size = 0x10000, scoped, tag = 'input window, operand 2, single buffered']
    #allocation8 [shape = 's32[1]{0}', space=sflag, size = 0x4, scoped, tag = 'scoped memory for tpu_custom_call.1']
    #allocation9 [shape = 'u8[2048]{0}', space=vmem, size = 0x800, scoped, tag = 'input window, operand 3, single buffered']
    #allocation10 [shape = 'u8[2048]{0}', space=vmem, size = 0x800, scoped, tag = 'output window, operand 0']
    %10 = vsyncpa [#allocation5], 0
    %11 = vsyncpa [#allocation3], 0
    %s12 = scalar_lea.sflag [#allocation3], 1
    %13 = vsyncpa %s12, 0
    %14 = vsyncpa [#allocation8], 0
    %15 = vsyncpa [#allocation4], 0
    %s16 = scalar_lea.sflag [#allocation4], 1
    %17 = vsyncpa %s16, 0
    loop: start=0, step=1, limit=4
    $region2: #{tpu_custom_call.1} parent=1 // loop_pre_header
      _
    $region3: #{tpu_custom_call.1} parent=1 // loop_header
      %s19 = sphi 0, %s23
      %p20 = scmp.ge.s32.totalorder %s19, 4
      %s26 = sphi 0, %s38
      %s27 = sphi 0, %s34
      %s28 = sphi 0, %s26
      %s29 = sphi 0, %s27
      %s30 = sphi 0, %s28
      %s31 = sphi 0, %s29
      %s39 = sphi 0, %s39
      %s41 = sphi 0, %s39
      %s42 = sphi 0, %s41
      %s56 = sphi 0, %s42
      %s64 = sphi 0, %s66
      %s67 = sphi 0, %s64
      %s68 = sphi 0, %s67
      %s84 = sphi 0, %s68
      %s88 = sphi 0, %s88
      %s90 = sphi 0, %s88
      %s91 = sphi 0, %s90
      %s105 = sphi 0, %s91
      %s109 = sphi 0, %s109
      %s111 = sphi 0, %s109
      %s112 = sphi 0, %s111
      %s126 = sphi 0, %s112
      %s130 = sphi 0, %s130
      %s132 = sphi 0, %s130
      %s133 = sphi 0, %s132
      %s147 = sphi 0, %s133
      %s155 = sphi 0, %s157
      %s158 = sphi 0, %s155
      %s159 = sphi 0, %s158
      %s175 = sphi 0, %s159
    $region4: #{tpu_custom_call.1} parent=1 // loop_header_branch
      %22 = sbr.rel (%p20) target = $region8
    $region5: #{tpu_custom_call.1} parent=1 // loop_body
      %s24 = ssub.s32 %s19, 1
      %s25 = ssub.s32 %s19, 2
      %s32 = sadd.s32 1, %s27
      %p33 = scmp.ge.s32.totalorder %s32, 1
      %s34 = scalar_select %p33, 0, %s32
      %s35 = sadd.s32 1, %s26
      %s36 = scalar_select %p33, %s35, %s26
      %p37 = scmp.ge.s32.totalorder %s36, 2
      %s38 = scalar_select %p37, 0, %s36
      %s40 = sadd.s32 %s39, 1
      %p43 = scmp.eq.s32.totalorder %s19, 1
      %p44 = scmp.ne.s32.totalorder %s39, %s41
      %p45 = scmp.eq.s32.totalorder %s19, 0
      %p46 = por %p44, %p45
      %p47 = scmp.ne.s32.totalorder %s39, %s41
      %p48 = scmp.eq.s32.totalorder %s24, 1
      %p49 = por %p47, %p48
      %p50 = scmp.ne.s32.totalorder %s41, %s42
      %p51 = scmp.eq.s32.totalorder %s24, 0
      %p52 = por %p50, %p51
      %p53 = scmp.ne.s32.totalorder %s41, %s42
      %p54 = scmp.eq.s32.totalorder %s25, 1
      %p55 = por %p53, %p54
      %p57 = scmp.ne.s32.totalorder %s42, %s56
      %p58 = scmp.eq.s32.totalorder %s25, 0
      %p59 = por %p57, %p58
      %s60 = ssub.s32 %s26, %s38
      %s61 = ssub.s32 %s27, %s34
      %s62 = sor.u32 %s60, %s61
      %p63 = scmp.eq.s32.totalorder %s62, 0
      %s65 = sadd.s32 %s64, 1
      %s66 = scalar_select %p63, %s64, %s65
      %p69 = pneg %p63
      %p70 = scmp.eq.s32.totalorder %s19, 1
      %p71 = por %p69, %p70
      %p72 = scmp.ne.s32.totalorder %s64, %s67
      %p73 = scmp.eq.s32.totalorder %s19, 0
      %p74 = por %p72, %p73
      %p75 = scmp.ne.s32.totalorder %s64, %s67
      %p76 = scmp.eq.s32.totalorder %s24, 1
      %p77 = por %p75, %p76
      %p78 = scmp.ne.s32.totalorder %s67, %s68
      %p79 = scmp.eq.s32.totalorder %s24, 0
      %p80 = por %p78, %p79
      %p81 = scmp.ne.s32.totalorder %s67, %s68
      %p82 = scmp.eq.s32.totalorder %s25, 1
      %p83 = por %p81, %p82
      %p85 = scmp.ne.s32.totalorder %s68, %s84
      %p86 = scmp.eq.s32.totalorder %s25, 0
      %p87 = por %p85, %p86
      %s89 = sadd.s32 %s88, 1
      %p92 = scmp.eq.s32.totalorder %s19, 1
      %p93 = scmp.ne.s32.totalorder %s88, %s90
      %p94 = scmp.eq.s32.totalorder %s19, 0
      %p95 = por %p93, %p94
      %p96 = scmp.ne.s32.totalorder %s88, %s90
      %p97 = scmp.eq.s32.totalorder %s24, 1
      %p98 = por %p96, %p97
      %p99 = scmp.ne.s32.totalorder %s90, %s91
      %p100 = scmp.eq.s32.totalorder %s24, 0
      %p101 = por %p99, %p100
      %p102 = scmp.ne.s32.totalorder %s90, %s91
      %p103 = scmp.eq.s32.totalorder %s25, 1
      %p104 = por %p102, %p103
      %p106 = scmp.ne.s32.totalorder %s91, %s105
      %p107 = scmp.eq.s32.totalorder %s25, 0
      %p108 = por %p106, %p107
      %s110 = sadd.s32 %s109, 1
      %p113 = scmp.eq.s32.totalorder %s19, 1
      %p114 = scmp.ne.s32.totalorder %s109, %s111
      %p115 = scmp.eq.s32.totalorder %s19, 0
      %p116 = por %p114, %p115
      %p117 = scmp.ne.s32.totalorder %s109, %s111
      %p118 = scmp.eq.s32.totalorder %s24, 1
      %p119 = por %p117, %p118
      %p120 = scmp.ne.s32.totalorder %s111, %s112
      %p121 = scmp.eq.s32.totalorder %s24, 0
      %p122 = por %p120, %p121
      %p123 = scmp.ne.s32.totalorder %s111, %s112
      %p124 = scmp.eq.s32.totalorder %s25, 1
      %p125 = por %p123, %p124
      %p127 = scmp.ne.s32.totalorder %s112, %s126
      %p128 = scmp.eq.s32.totalorder %s25, 0
      %p129 = por %p127, %p128
      %s131 = sadd.s32 %s130, 1
      %p134 = scmp.eq.s32.totalorder %s19, 1
      %p135 = scmp.ne.s32.totalorder %s130, %s132
      %p136 = scmp.eq.s32.totalorder %s19, 0
      %p137 = por %p135, %p136
      %p138 = scmp.ne.s32.totalorder %s130, %s132
      %p139 = scmp.eq.s32.totalorder %s24, 1
      %p140 = por %p138, %p139
      %p141 = scmp.ne.s32.totalorder %s132, %s133
      %p142 = scmp.eq.s32.totalorder %s24, 0
      %p143 = por %p141, %p142
      %p144 = scmp.ne.s32.totalorder %s132, %s133
      %p145 = scmp.eq.s32.totalorder %s25, 1
      %p146 = por %p144, %p145
      %p148 = scmp.ne.s32.totalorder %s133, %s147
      %p149 = scmp.eq.s32.totalorder %s25, 0
      %p150 = por %p148, %p149
      %s151 = ssub.s32 %s26, %s38
      %s152 = ssub.s32 %s27, %s34
      %s153 = sor.u32 %s151, %s152
      %p154 = scmp.eq.s32.totalorder %s153, 0
      %s156 = sadd.s32 %s155, 1
      %s157 = scalar_select %p154, %s155, %s156
      %p160 = pneg %p154
      %p161 = scmp.eq.s32.totalorder %s19, 1
      %p162 = por %p160, %p161
      %p163 = scmp.ne.s32.totalorder %s155, %s158
      %p164 = scmp.eq.s32.totalorder %s19, 0
      %p165 = por %p163, %p164
      %p166 = scmp.ne.s32.totalorder %s155, %s158
      %p167 = scmp.eq.s32.totalorder %s24, 1
      %p168 = por %p166, %p167
      %p169 = scmp.ne.s32.totalorder %s158, %s159
      %p170 = scmp.eq.s32.totalorder %s24, 0
      %p171 = por %p169, %p170
      %p172 = scmp.ne.s32.totalorder %s158, %s159
      %p173 = scmp.eq.s32.totalorder %s25, 1
      %p174 = por %p172, %p173
      %p176 = scmp.ne.s32.totalorder %s159, %s175
      %p177 = scmp.eq.s32.totalorder %s25, 0
      %p178 = por %p176, %p177
      %p179 = scmp.le.s32.totalorder 1, %s19
      %p180 = scmp.lt.s32.totalorder %s19, 3
      %p181 = pnand %p179, %p180
      %p182 = pneg %p181
      // Predicated region
      $region9: #{tpu_custom_call.1} parent=5 // pred_check
        _
      $region10: #{tpu_custom_call.1} parent=5 // pred_check_branch
        %184 = sbr.rel (%p181) target = $region12
      $region11: #{tpu_custom_call.1} parent=5 // pred_region
        %s185 = ssub.s32 %s19, 1
        // Predicated region
        $region13: #{tpu_custom_call.1} parent=11 // pred_check
          %p186 = pneg %p52
        $region14: #{tpu_custom_call.1} parent=11 // pred_check_branch
          %188 = sbr.rel (%p186) target = $region16
        $region15: #{tpu_custom_call.1} parent=11 // pred_region
          %190 = vsyncadd [#allocation5], 0
          %s192 = sshll.u32 %s0, 4
          %s193 = int_to_ptr.hbm [resolvable:$true] %s192
          %195 = dma.hbm_to_smem %s193, 16, [#allocation2], [#allocation5]
        $region16: #{tpu_custom_call.1} parent=11 // pred_fallthru
          _
        // Predicated region
        $region17: #{tpu_custom_call.1} parent=11 // pred_check
          %p196 = pneg %p101
        $region18: #{tpu_custom_call.1} parent=11 // pred_check_branch
          %198 = sbr.rel (%p196) target = $region20
        $region19: #{tpu_custom_call.1} parent=11 // pred_region
          %200 = vsyncadd [#allocation8], 0
          %s201 = sshll.u32 %s2, 4
          %s202 = int_to_ptr.hbm [resolvable:$true] %s201
          %s203 = sshll.u32 [#allocation7], 4
          %s204 = int_to_ptr.vmem [resolvable:$true] %s203
          %209 = dma.hbm_to_vmem [thread:$0]  %s202, 2048, %s204, [#allocation8], 128, 128, 8
        $region20: #{tpu_custom_call.1} parent=11 // pred_fallthru
          _
        // Predicated region
        $region21: #{tpu_custom_call.1} parent=11 // pred_check
          %p210 = pneg %p122
        $region22: #{tpu_custom_call.1} parent=11 // pred_check_branch
          %212 = sbr.rel (%p210) target = $region24
        $region23: #{tpu_custom_call.1} parent=11 // pred_region
          %214 = vsyncadd [#allocation8], 0
          %s216 = sshll.u32 %s3, 4
          %s217 = int_to_ptr.hbm [resolvable:$true] %s216
          %s218 = sshll.u32 [#allocation9], 4
          %s219 = int_to_ptr.vmem [resolvable:$true] %s218
          %221 = dma.hbm_to_vmem [thread:$0]  %s217, 64, %s219, [#allocation8]
        $region24: #{tpu_custom_call.1} parent=11 // pred_fallthru
          _
        // Predicated region
        $region25: #{tpu_custom_call.1} parent=11 // pred_check
          %p222 = pneg %p143
        $region26: #{tpu_custom_call.1} parent=11 // pred_check_branch
          %224 = sbr.rel (%p222) target = $region28
        $region27: #{tpu_custom_call.1} parent=11 // pred_region
          _
        $region28: #{tpu_custom_call.1} parent=11 // pred_fallthru
          _
      $region12: #{tpu_custom_call.1} parent=5 // pred_fallthru
        _
      %p225 = scmp.lt.s32.totalorder %s19, 2
      // Predicated region
      $region29: #{tpu_custom_call.1} parent=5 // pred_check
        %p226 = pneg %p225
      $region30: #{tpu_custom_call.1} parent=5 // pred_check_branch
        %228 = sbr.rel (%p226) target = $region32
      $region31: #{tpu_custom_call.1} parent=5 // pred_region
        // Predicated region
        $region33: #{tpu_custom_call.1} parent=31 // pred_check
          %p229 = pneg %p74
        $region34: #{tpu_custom_call.1} parent=31 // pred_check_branch
          %231 = sbr.rel (%p229) target = $region36
        $region35: #{tpu_custom_call.1} parent=31 // pred_region
          %s232 = sand.u32 %s64, 1
          %s233 = scalar_lea.sflag [#allocation3], %s232
          %s234 = sand.u32 %s64, 1
          %s235 = smul.addr %s234, 2
          %s236 = scalar_lea.vmem [#allocation6], %s235
          %238 = vsyncadd %s233, 0
          %s239 = sadd.s32 %s27, %s26
          %s240 = smul.addr %s239, 2
          %s241 = scalar_lea.hbm %s1, %s240
          %s243 = sshll.u32 %s241, 4
          %s244 = int_to_ptr.hbm [resolvable:$true] %s243
          %s245 = sshll.u32 %s236, 4
          %s246 = int_to_ptr.vmem [resolvable:$true] %s245
          %248 = dma.hbm_to_vmem [thread:$0]  %s244, 32, %s246, %s233
        $region36: #{tpu_custom_call.1} parent=31 // pred_fallthru
          _
      $region32: #{tpu_custom_call.1} parent=5 // pred_fallthru
        _
      %p249 = scmp.le.s32.totalorder 1, %s19
      %p250 = scmp.lt.s32.totalorder %s19, 3
      %p251 = pnand %p249, %p250
      %p252 = pneg %p251
      // Predicated region
      $region37: #{tpu_custom_call.1} parent=5 // pred_check
        _
      $region38: #{tpu_custom_call.1} parent=5 // pred_check_branch
        %254 = sbr.rel (%p251) target = $region40
      $region39: #{tpu_custom_call.1} parent=5 // pred_region
        %s255 = ssub.s32 %s19, 1
        // Predicated region
        $region41: #{tpu_custom_call.1} parent=39 // pred_check
          %p256 = pneg %p52
        $region42: #{tpu_custom_call.1} parent=39 // pred_check_branch
          %258 = sbr.rel (%p256) target = $region44
        $region43: #{tpu_custom_call.1} parent=39 // pred_region
          %260 = dma.done [#allocation5], 16
        $region44: #{tpu_custom_call.1} parent=39 // pred_fallthru
          _
        %s261 = sand.u32 %s67, 1
        %s262 = scalar_lea.sflag [#allocation3], %s261
        %s263 = sand.u32 %s67, 1
        %s264 = smul.addr %s263, 2
        %s265 = scalar_lea.vmem [#allocation6], %s264
        // Predicated region
        $region45: #{tpu_custom_call.1} parent=39 // pred_check
          %p266 = pneg %p80
        $region46: #{tpu_custom_call.1} parent=39 // pred_check_branch
          %268 = sbr.rel (%p266) target = $region48
        $region47: #{tpu_custom_call.1} parent=39 // pred_region
          %270 = dma.done %s262, 32
        $region48: #{tpu_custom_call.1} parent=39 // pred_fallthru
          _
        // Predicated region
        $region49: #{tpu_custom_call.1} parent=39 // pred_check
          %p271 = pneg %p101
        $region50: #{tpu_custom_call.1} parent=39 // pred_check_branch
          %273 = sbr.rel (%p271) target = $region52
        $region51: #{tpu_custom_call.1} parent=39 // pred_region
          %275 = dma.done [#allocation8], 2048
        $region52: #{tpu_custom_call.1} parent=39 // pred_fallthru
          _
        // Predicated region
        $region53: #{tpu_custom_call.1} parent=39 // pred_check
          %p276 = pneg %p122
        $region54: #{tpu_custom_call.1} parent=39 // pred_check_branch
          %278 = sbr.rel (%p276) target = $region56
        $region55: #{tpu_custom_call.1} parent=39 // pred_region
          %280 = dma.done [#allocation8], 64
        $region56: #{tpu_custom_call.1} parent=39 // pred_fallthru
          _
        %281 = sfence
        %p282 = pneg %p52
        %p283 = pneg %p49
        %s284 = sand.u32 %s67, 1
        %s285 = scalar_lea.sflag [#allocation3], %s284
        %s286 = sand.u32 %s67, 1
        %s287 = smul.addr %s286, 2
        %s288 = scalar_lea.vmem [#allocation6], %s287
        %p289 = pneg %p80
        %p290 = pneg %p77
        %p291 = pneg %p101
        %p292 = pneg %p98
        %p293 = pneg %p122
        %p294 = pneg %p119
        %p295 = pneg %p143
        %p296 = pneg %p140
        %p297 = pneg %p171
        %p298 = pneg %p168
        %s299 = sand.u32 %s158, 1
        %s300 = scalar_lea.sflag [#allocation4], %s299
        %s301 = sand.u32 %s158, 1
        %s302 = smul.addr %s301, 2
        %s303 = scalar_lea.vmem [#allocation10], %s302
        %v304 = vld [vmem:[#allocation9] sm:$0xf]
        %v305 = vld [vmem:[%s4] sm:$0x1]
        %s306 = smul.u32 %s28, 4
        %s307 = sld [smem:[#allocation2 + %s306]]
        %v308 = vstv %s307
        %v309 = vmul.f32 %v308, %v304
        %v310 = vadd.f32 %v305, %v309
        %s311 = sadd.s32 %s306, 1
        %s312 = sld [smem:[#allocation2 + %s311]]
        %v313 = vstv %s312
        %v314 = vmul.f32 %v313, %v304
        %316 = vst [vmem:[#allocation1] sm:$0xff] %v314
        %s317 = scalar_lea.vmem [#allocation1], 1
        %v318 = vld [vmem:[%s317] ss:$9 sm:$0xff]
        %v320 = vadd.f32 %v310, %v318
        %s321 = sadd.s32 %s306, 2
        %s322 = sld [smem:[#allocation2 + %s321]]
        %v323 = vstv %s322
        %v324 = vmul.f32 %v323, %v304
        %326 = vst [vmem:[#allocation1] sm:$0xff] %v324
        %s327 = scalar_lea.vmem [#allocation1], 2
        %v328 = vld [vmem:[%s327] ss:$9 sm:$0xff]
        %v330 = vadd.f32 %v320, %v328
        %s331 = sadd.s32 %s306, 3
        %s332 = sld [smem:[#allocation2 + %s331]]
        %v333 = vstv %s332
        %v334 = vmul.f32 %v333, %v304
        %336 = vst [vmem:[#allocation1] sm:$0xff] %v334
        %s337 = scalar_lea.vmem [#allocation1], 3
        %v338 = vld [vmem:[%s337] ss:$9 sm:$0xff]
        %v340 = vadd.f32 %v330, %v338
        %v341 = vld [vmem:[%s265] sm:$0x3]
        %v342 = vld [vmem:[#allocation7] sm:$0xff]
        %v343 = vld [vmem:[#allocation7 + $0x8] sm:$0xff]
        %v344 = vld [vmem:[#allocation7 + $0x10] sm:$0xff]
        %v345 = vld [vmem:[#allocation7 + $0x18] sm:$0xff]
        %v346 = vld [vmem:[#allocation7 + $0x20] sm:$0xff]
        %v347 = vld [vmem:[#allocation7 + $0x28] sm:$0xff]
        %v348 = vld [vmem:[#allocation7 + $0x30] sm:$0xff]
        %v349 = vld [vmem:[#allocation7 + $0x38] sm:$0xff]
        %v350 = vld [vmem:[#allocation7 + $0x40] sm:$0xff]
        %v351 = vld [vmem:[#allocation7 + $0x48] sm:$0xff]
        %v352 = vld [vmem:[#allocation7 + $0x50] sm:$0xff]
        %v353 = vld [vmem:[#allocation7 + $0x58] sm:$0xff]
        %v354 = vld [vmem:[#allocation7 + $0x60] sm:$0xff]
        %v355 = vld [vmem:[#allocation7 + $0x68] sm:$0xff]
        %v356 = vld [vmem:[#allocation7 + $0x70] sm:$0xff]
        %v357 = vld [vmem:[#allocation7 + $0x78] sm:$0xff]
        %v359 = vperm.slane %v340, 0
        %361 = vmatpush.msra.mxu0 %v357
        %362 = vmatpush.msra.mxu0 %v356
        %363 = vmatpush.msra.mxu0 %v355
        %364 = vmatpush.msra.mxu0 %v354
        %365 = vmatpush.msra.mxu0 %v353
        %366 = vmatpush.msra.mxu0 %v352
        %367 = vmatpush.msra.mxu0 %v351
        %368 = vmatpush.msra.mxu0 %v350
        %369 = vmatpush.msra.mxu0 %v349
        %370 = vmatpush.msra.mxu0 %v348
        %371 = vmatpush.msra.mxu0 %v347
        %372 = vmatpush.msra.mxu0 %v346
        %373 = vmatpush.msra.mxu0 %v345
        %374 = vmatpush.msra.mxu0 %v344
        %375 = vmatpush.msra.mxu0 %v343
        %376 = vmatpush.msra.mxu0 %v342
        %377 = vmatmul.f32.gmra.mxu0 %v341
        %v378 = vpop.f32.mrf.mxu0
        %v379 = vadd.f32 %v359, %v378
        %380 = vdwg.mxu0
        %381 = vst [vmem:[%s303] sm:$0x3] %v379
        %s382 = sand.u32 %s158, 1
        %s383 = scalar_lea.sflag [#allocation4], %s382
        %s384 = sand.u32 %s158, 1
        %s385 = smul.addr %s384, 2
        %s386 = scalar_lea.vmem [#allocation10], %s385
        // Predicated region
        $region57: #{tpu_custom_call.1} parent=39 // pred_check
          %p387 = pneg %p168
        $region58: #{tpu_custom_call.1} parent=39 // pred_check_branch
          %389 = sbr.rel (%p387) target = $region60
        $region59: #{tpu_custom_call.1} parent=39 // pred_region
          %391 = vsyncadd %s383, 0
          %s392 = sadd.s32 %s29, %s28
          %s393 = smul.addr %s392, 2
          %s394 = scalar_lea.hbm %s5, %s393
          %s396 = sshll.u32 %s386, 4
          %s397 = int_to_ptr.vmem [resolvable:$true] %s396
          %s398 = sshll.u32 %s394, 4
          %s399 = int_to_ptr.hbm [resolvable:$true] %s398
          %401 = dma.vmem_to_hbm [thread:$0]  %s397, 32, %s399, %s383
        $region60: #{tpu_custom_call.1} parent=39 // pred_fallthru
          _
      $region40: #{tpu_custom_call.1} parent=5 // pred_fallthru
        _
      %p402 = scmp.le.s32.totalorder 2, %s19
      // Predicated region
      $region61: #{tpu_custom_call.1} parent=5 // pred_check
        %p403 = pneg %p402
      $region62: #{tpu_custom_call.1} parent=5 // pred_check_branch
        %405 = sbr.rel (%p403) target = $region64
      $region63: #{tpu_custom_call.1} parent=5 // pred_region
        %s406 = ssub.s32 %s19, 2
        // Predicated region
        $region65: #{tpu_custom_call.1} parent=63 // pred_check
          %p407 = pneg %p174
        $region66: #{tpu_custom_call.1} parent=63 // pred_check_branch
          %409 = sbr.rel (%p407) target = $region68
        $region67: #{tpu_custom_call.1} parent=63 // pred_region
          %s410 = sand.u32 %s159, 1
          %s411 = scalar_lea.sflag [#allocation4], %s410
          %s412 = sand.u32 %s159, 1
          %s413 = smul.addr %s412, 2
          %s414 = scalar_lea.vmem [#allocation10], %s413
          %416 = dma.done %s411, 32
        $region68: #{tpu_custom_call.1} parent=63 // pred_fallthru
          _
      $region64: #{tpu_custom_call.1} parent=5 // pred_fallthru
        _
    $region6: #{tpu_custom_call.1} parent=1 // loop_footer
      %s23 = sadd.s32 1, %s19
    $region7: #{tpu_custom_call.1} parent=1 // loop_footer_branch
      %18 = sbr.rel target = $region3
    $region8: #{tpu_custom_call.1} parent=1 // loop_exit
      _
    %417 = vsyncpa [#allocation3], 1
    %s418 = scalar_lea.sflag [#allocation3], 1
    %419 = vsyncpa %s418, 1
    %420 = vsyncpa [#allocation8], 1
    %421 = vsyncpa [#allocation4], 1
    %s422 = scalar_lea.sflag [#allocation4], 1
    %423 = vsyncpa %s422, 1
    %424 = vsyncpa [#allocation5], 1
    %s425 = scalar_lea.sflag [#allocation5], 1
    %426 = vsyncpa %s425, 1

</llo_original>
